<compile_context>
chip_gen: v7x
topology: tpu7x:2x2x1
jax: 0.10.0
libtpu: 0.0.40
codegen_flags: <defaults>
</compile_context>

<pallas_src>
import math
from functools import partial

import jax
import jax.numpy as jnp
from jax.experimental import pallas as pl
from jax.experimental.pallas import tpu as pltpu

_LOG_CLAMPED_ZERO = math.log(1e-4)  # log of clamp(one_hot == 0, min=1e-4)


def _sce_kernel(pred_ref, labels_ref, out_ref, *, a, b):
    # pred_ref:   (T, C) logits (samples on sublanes, classes on lanes)
    # labels_ref: (T, 1) int32 class ids
    # out_ref:    (T, 1) float32 per-sample loss
    pred = pred_ref[...].astype(jnp.float32)                  # (T, C)
    labels = labels_ref[...]                                   # (T, 1)
    t, c = pred.shape

    class_ids = jax.lax.broadcasted_iota(jnp.int32, (t, c), 1)
    is_label = class_ids == labels                              # (T, C)

    # numerically-stable log-sum-exp over the class (lane) axis
    m = jnp.max(pred, axis=1, keepdims=True)                    # (T, 1)
    ex = jnp.exp(pred - m)                                      # (T, C)
    denom = jnp.sum(ex, axis=1, keepdims=True)                  # (T, 1)

    # true-class logit via masked sum (exact "gather")
    pred_y = jnp.sum(jnp.where(is_label, pred, 0.0), axis=1, keepdims=True)

    # cross entropy in the log domain: -log_softmax[y] = log(denom) + m - pred_y
    ce = jnp.log(denom) + m - pred_y                            # (T, 1)

    # reverse cross entropy:
    #   -sum_c clip(softmax_c, 1e-7, 1) * log(clip(onehot_c, 1e-4, 1))
    # = -log(1e-4) * ( sum_c clip(softmax_c, 1e-7) - clip(softmax_y, 1e-7) )
    # (upper clip dropped: softmax <= 1 by construction)
    inv_denom = pl.reciprocal(denom, approx=False)              # (T, 1), exact
    sm_sum = jnp.sum(jnp.maximum(ex * inv_denom, 1e-7), axis=1, keepdims=True)
    p_y = jnp.maximum(jnp.exp(pred_y - m) * inv_denom, 1e-7)    # softmax_y, from (T,1) only
    rce = (-_LOG_CLAMPED_ZERO) * (sm_sum - p_y)                 # (T, 1)

    out_ref[...] = (a * ce + b * rce).astype(out_ref.dtype)


def _round_up(x, m):
    return ((x + m - 1) // m) * m


def sce_loss(pred, labels, *, num_classes=10, a=1.0, b=1.0, tile_n=8192):
    """pred: (N, C) float logits; labels: (N,) int class ids -> (N,) float32 loss."""
    n, c = pred.shape
    assert c == num_classes

    # Free reshape (contiguous), no HBM copy / cast of pred in the wrapper.
    labels_2d = labels.astype(jnp.int32).reshape(n, 1)

    # Sublane multiple depends on pred dtype packing (f32: 8, bf16: 16, int8/fp8: 32).
    itemsize = jnp.dtype(pred.dtype).itemsize
    sub = {4: 8, 2: 16, 1: 32}.get(itemsize, 8)

    n_r = _round_up(n, sub)
    tile = min(max(sub, (int(tile_n) // sub) * sub), n_r)
    # Ensure >= 2 grid steps for medium/large batches so v7x megacore can split work.
    if tile >= n_r and n_r >= 256:
        tile = _round_up((n_r + 1) // 2, sub)
    grid = (pl.cdiv(n, tile),)

    # Rough VMEM budget: ~(2 double-buffered blocks + full-tile temporaries),
    # each tile*512 B after lane padding to 128.  Clamp to stay safe on v7x (64 MiB).
    vmem_limit = int(min(64 * 1024 * 1024, max(32 * 1024 * 1024, 12 * tile * 512)))

    kernel = partial(_sce_kernel, a=float(a), b=float(b))
    out = pl.pallas_call(
        kernel,
        out_shape=jax.ShapeDtypeStruct((n, 1), jnp.float32),
        grid=grid,
        in_specs=[
            pl.BlockSpec((tile, c), lambda i: (i, 0)),   # full class dim, tiled batch rows
            pl.BlockSpec((tile, 1), lambda i: (i, 0)),
        ],
        out_specs=pl.BlockSpec((tile, 1), lambda i: (i, 0)),
        compiler_params=pltpu.CompilerParams(
            dimension_semantics=("parallel",),
            vmem_limit_bytes=vmem_limit,
        ),
    )(pred, labels_2d)
    return out[:, 0]


def _reference(pred, labels, num_classes=10, a=1.0, b=1.0):
    # pure-JAX reference mirroring the PyTorch module (reduction='none')
    log_sm = jax.nn.log_softmax(pred.astype(jnp.float32), axis=1)
    oh = jax.nn.one_hot(labels, num_classes, dtype=jnp.float32)
    ce = -jnp.sum(oh * log_sm, axis=1)
    sm = jnp.clip(jax.nn.softmax(pred.astype(jnp.float32), axis=1), 1e-7, 1.0)
    rce = -jnp.sum(sm * jnp.log(jnp.clip(oh, 1e-4, 1.0)), axis=1)
    return a * ce + b * rce


if __name__ == "__main__":
    num_classes = 10

    # Primary small example (batch=8, classes=10), matching the module's forward.
    batch = 8
    key = jax.random.PRNGKey(0)
    k_pred, k_lab = jax.random.split(key)
    pred = jax.random.normal(k_pred, (batch, num_classes), dtype=jnp.float32) * 2.0
    labels = jax.random.randint(k_lab, (batch,), 0, num_classes, dtype=jnp.int32)

    loss = sce_loss(pred, labels, num_classes=num_classes, a=1.0, b=1.0)
    jax.block_until_ready(loss)
    ref = _reference(pred, labels, num_classes=num_classes, a=1.0, b=1.0)
    assert loss.shape == (batch,)
    assert jnp.allclose(loss, ref, atol=1e-4, rtol=1e-4), (loss, ref)

    # Exercise the ragged tail (masked partial block) and a multi-step parallel grid.
    for bsz in (100, 1000):
        kp, kl = jax.random.split(jax.random.PRNGKey(bsz))
        p2 = jax.random.normal(kp, (bsz, num_classes), dtype=jnp.float32) * 2.0
        l2 = jax.random.randint(kl, (bsz,), 0, num_classes, dtype=jnp.int32)
        out2 = sce_loss(p2, l2, num_classes=num_classes, a=0.5, b=2.0)
        jax.block_until_ready(out2)
        ref2 = _reference(p2, l2, num_classes=num_classes, a=0.5, b=2.0)
        assert out2.shape == (bsz,)
        assert jnp.allclose(out2, ref2, atol=1e-4, rtol=1e-4)

    print("KERNEL_OK")
</pallas_src>

<mosaic_0001>
module attributes {stable_mosaic.version = 11 : i64} {
  func.func @_sce_kernel(%arg0: i32, %arg1: memref<8x10xf32, #tpu.memory_space<vmem>>, %arg2: memref<8x1xi32, #tpu.memory_space<vmem>>, %arg3: memref<8x1xf32, #tpu.memory_space<vmem>>) attributes {dimension_semantics = [#tpu.dimension_semantics<parallel>], iteration_bounds = array<i64: 1>, scalar_prefetch = 0 : i64, scratch_operands = 0 : i64, tpu.core_type = #tpu.core_type<tc>, window_params = [{transform_indices = @transform_0, window_bounds = array<i64: 8, 10>}, {transform_indices = @transform_1, window_bounds = array<i64: 8, 1>}, {transform_indices = @transform_2, window_bounds = array<i64: 8, 1>}]} {
    %c0 = arith.constant 0 : index
    %c0_0 = arith.constant 0 : index
    %0 = vector.load %arg1[%c0, %c0_0] : memref<8x10xf32, #tpu.memory_space<vmem>>, vector<8x10xf32>
    %c0_1 = arith.constant 0 : index
    %c0_2 = arith.constant 0 : index
    %1 = vector.load %arg2[%c0_1, %c0_2] : memref<8x1xi32, #tpu.memory_space<vmem>>, vector<8x1xi32>
    %2 = tpu.iota {dimensions = array<i32: 1>} : vector<8x10xi32>
    %3 = vector.broadcast %1 : vector<8x1xi32> to vector<8x10xi32>
    %4 = arith.cmpi eq, %2, %3 : vector<8x10xi32>
    %cst = arith.constant dense<0xFF800000> : vector<8xf32>
    %5 = vector.multi_reduction <maximumf>, %0, %cst [1] : vector<8x10xf32> to vector<8xf32>
    %6 = vector.shape_cast %5 : vector<8xf32> to vector<8x1xf32>
    %7 = vector.broadcast %6 : vector<8x1xf32> to vector<8x10xf32>
    %8 = arith.subf %0, %7 : vector<8x10xf32>
    %9 = math.exp %8 : vector<8x10xf32>
    %cst_3 = arith.constant dense<0.000000e+00> : vector<8xf32>
    %10 = vector.multi_reduction <add>, %9, %cst_3 [1] : vector<8x10xf32> to vector<8xf32>
    %11 = vector.shape_cast %10 : vector<8xf32> to vector<8x1xf32>
    %cst_4 = arith.constant 0.000000e+00 : f32
    %12 = vector.broadcast %cst_4 : f32 to vector<8x10xf32>
    %13 = arith.select %4, %0, %12 : vector<8x10xi1>, vector<8x10xf32>
    %cst_5 = arith.constant dense<0.000000e+00> : vector<8xf32>
    %14 = vector.multi_reduction <add>, %13, %cst_5 [1] : vector<8x10xf32> to vector<8xf32>
    %15 = vector.shape_cast %14 : vector<8xf32> to vector<8x1xf32>
    %16 = math.log %11 : vector<8x1xf32>
    %17 = arith.addf %16, %6 : vector<8x1xf32>
    %18 = arith.subf %17, %15 : vector<8x1xf32>
    %19 = tpu.reciprocal %11 : vector<8x1xf32> -> vector<8x1xf32>
    %20 = vector.broadcast %19 : vector<8x1xf32> to vector<8x10xf32>
    %21 = arith.mulf %9, %20 : vector<8x10xf32>
    %cst_6 = arith.constant 1.000000e-07 : f32
    %22 = vector.broadcast %cst_6 : f32 to vector<8x10xf32>
    %23 = arith.maximumf %21, %22 : vector<8x10xf32>
    %cst_7 = arith.constant dense<0.000000e+00> : vector<8xf32>
    %24 = vector.multi_reduction <add>, %23, %cst_7 [1] : vector<8x10xf32> to vector<8xf32>
    %25 = vector.shape_cast %24 : vector<8xf32> to vector<8x1xf32>
    %26 = arith.subf %15, %6 : vector<8x1xf32>
    %27 = math.exp %26 : vector<8x1xf32>
    %28 = arith.mulf %27, %19 : vector<8x1xf32>
    %cst_8 = arith.constant 1.000000e-07 : f32
    %29 = vector.broadcast %cst_8 : f32 to vector<8x1xf32>
    %30 = arith.maximumf %28, %29 : vector<8x1xf32>
    %31 = arith.subf %25, %30 : vector<8x1xf32>
    %cst_9 = arith.constant 9.21034049 : f32
    %32 = vector.broadcast %cst_9 : f32 to vector<8x1xf32>
    %33 = arith.mulf %32, %31 : vector<8x1xf32>
    %cst_10 = arith.constant 1.000000e+00 : f32
    %34 = vector.broadcast %cst_10 : f32 to vector<8x1xf32>
    %35 = arith.mulf %34, %18 : vector<8x1xf32>
    %cst_11 = arith.constant 1.000000e+00 : f32
    %36 = vector.broadcast %cst_11 : f32 to vector<8x1xf32>
    %37 = arith.mulf %36, %33 : vector<8x1xf32>
    %38 = arith.addf %35, %37 : vector<8x1xf32>
    %c0_12 = arith.constant 0 : index
    %c0_13 = arith.constant 0 : index
    %39 = vector.load %arg3[%c0_12, %c0_13] : memref<8x1xf32, #tpu.memory_space<vmem>>, vector<8x1xf32>
    tpu.vector_store %arg3[%c0_12, %c0_13], %38 {strides = array<i32>} : memref<8x1xf32, #tpu.memory_space<vmem>>, vector<8x1xf32>,
    return
  }
  func.func @transform_0(%arg0: i32) -> (i32, i32) {
    %c0_i32 = arith.constant 0 : i32
    %c0_i32_0 = arith.constant 0 : i32
    return %arg0, %c0_i32 : i32, i32
  }
  func.func @transform_1(%arg0: i32) -> (i32, i32) {
    %c0_i32 = arith.constant 0 : i32
    %c0_i32_0 = arith.constant 0 : i32
    return %arg0, %c0_i32 : i32, i32
  }
  func.func @transform_2(%arg0: i32) -> (i32, i32) {
    %c0_i32 = arith.constant 0 : i32
    %c0_i32_0 = arith.constant 0 : i32
    return %arg0, %c0_i32 : i32, i32
  }
}

</mosaic_0001>

<llo_original>
// kernel: tpu_custom_call.1
$region0: #{tpu_custom_call.1}
  #allocation0 [shape = 'u32[]', space=smem, size = 0x4, offset = 0x4, fixed_abs, tag = 'smem constant byte address 0x4 - core index']
  #allocation1 [shape = 'u32[144,128]{1,0:T(1,128)}', space=vmem, size = 0x12000, scoped, tag = 'internal scratch']
  %s0 = inlined_call_operand.vmem [shape: f32[8,10], index: 0, kind: input, shape index: {}]
  %s1 = inlined_call_operand.vmem [shape: s32[8,1], index: 1, kind: input, shape index: {}]
  %s2 = inlined_call_operand.vmem [shape: f32[8,1], index: 2, kind: output, shape index: {}]
  %s3 = sld [smem:[#allocation0]]
  $region18: #{tpu_custom_call.1} parent=0
    _
  %s5 = ssub.s32 1, %s3
  %s6 = scalar_select 0, %s5, %s3
  // Predicated region
  $region2: #{tpu_custom_call.1} parent=0 // pred_check
    _
  $region3: #{tpu_custom_call.1} parent=0 // pred_check_branch
    %8 = sbr.rel (0) target = $region5
  $region4: #{tpu_custom_call.1} parent=0 // pred_region
    _
  $region5: #{tpu_custom_call.1} parent=0 // pred_fallthru
    _
  // Predicated region
  $region6: #{tpu_custom_call.1} parent=0 // pred_check
    _
  $region7: #{tpu_custom_call.1} parent=0 // pred_check_branch
    %10 = sbr.rel (0) target = $region9
  $region8: #{tpu_custom_call.1} parent=0 // pred_region
    _
  $region9: #{tpu_custom_call.1} parent=0 // pred_fallthru
    _
  %v11 = vld [vmem:[%s0] sm:$0xff]
  %v12 = vld [vmem:[%s1] sm:$0xff]
  %v13 = vlaneseq
  %v14 = vand.u32 %v13, 127
  %15 = vset.pattern.permute.xlu0 0
  %16 = vperm.xlu0 %15, %v12
  %v17 = vpop.permute.xlu0 %16
  %vm18 = vcmp.eq.s32.totalorder %v14, %v17
  %vm19 = vcmask 80896
  %v20 = vsel %vm19, %v11, -inf
  %21 = vmax.xlane.f32.xlu0 %v20
  %v22 = vpop.xlane.xlu0 %21
  %v23 = vsub.f32 %v11, %v22
  %v24 = vmul.f32 %v23, 1.442695
  %v25 = vpow.pop %v24
  %v26 = vsel %vm19, %v25, 0.0
  %27 = vadd.xlane.f32.xlu0 %v26
  %v28 = vpop.xlane.xlu0 %27
  %v29 = vsel %vm18, %v11, 0.0
  %v30 = vsel %vm19, %v29, 0.0
  %31 = vadd.xlane.f32.xlu0 %v30
  %v32 = vpop.xlane.xlu0 %31
  %v33 = vlog2.pop %v28
  %v34 = vmul.f32 %v33, 0.6931472
  %v35 = vadd.f32 %v34, %v22
  %v36 = vsub.f32 %v35, %v32
  %v37 = vrcp.pop %v28
  %v38 = vmul.f32 %v25, %v37
  %v39 = vmax.f32 %v38, 1e-07
  %v40 = vsel %vm19, %v39, 0.0
  %41 = vadd.xlane.f32.xlu0 %v40
  %v42 = vpop.xlane.xlu0 %41
  %v43 = vsub.f32 %v32, %v22
  %v44 = vmul.f32 %v43, 1.442695
  %v45 = vpow.pop %v44
  %v46 = vmul.f32 %v45, %v37
  %v47 = vmax.f32 %v46, 1e-07
  %v48 = vsub.f32 %v42, %v47
  %v49 = vmul.f32 %v48, 9.2103405
  %v50 = vadd.f32 %v36, %v49
  %vm51 = vcmask 7168
  %52 = vst.msk [vmem:[%s2] sm:$0xff] %vm51, %v50
  // Predicated region
  $region10: #{tpu_custom_call.1} parent=0 // pred_check
    _
  $region11: #{tpu_custom_call.1} parent=0 // pred_check_branch
    %54 = sbr.rel (0) target = $region13
  $region12: #{tpu_custom_call.1} parent=0 // pred_region
    _
  $region13: #{tpu_custom_call.1} parent=0 // pred_fallthru
    _
  // Predicated region
  $region14: #{tpu_custom_call.1} parent=0 // pred_check
    _
  $region15: #{tpu_custom_call.1} parent=0 // pred_check_branch
    %56 = sbr.rel (0) target = $region17
  $region16: #{tpu_custom_call.1} parent=0 // pred_region
    _
  $region17: #{tpu_custom_call.1} parent=0 // pred_fallthru
    _

</llo_original>
